<compile_context>
chip_gen: v5e
topology: v5e:2x2
jax: 0.10.0
libtpu: 0.0.40
codegen_flags: <defaults>
</compile_context>

<pallas_src>
import functools

import jax
import jax.numpy as jnp
from jax import lax
from jax.experimental import pallas as pl
from jax.experimental.pallas import tpu as pltpu

_EPS = 1e-12  # matches torch.nn.functional.normalize default


def _accumulate_one_sample(fs_ref, ft_ref, acc_ref, b, elemwise_acc):
    """acc += per-sample squared-diff contribution (no scalar reduce here)."""
    xs = fs_ref[b]  # (N, Cs): leading-axis index -> address offset only
    xt = ft_ref[b]  # (N, Ct)

    # Gram = X @ X^T via a (1, 1) contraction: no explicit transpose, f32 accum.
    dn = (((1,), (1,)), ((), ()))
    gs = lax.dot_general(xs, xs, dn, preferred_element_type=jnp.float32)  # (N, N)
    gt = lax.dot_general(xt, xt, dn, preferred_element_type=jnp.float32)  # (N, N)

    # F.normalize(G, dim=1) == column-wise L2 normalize of each (N, N) slice,
    # fused as G * rsqrt(max(ss, eps^2))  (== G / max(|v|, eps)).
    eps2 = jnp.float32(_EPS * _EPS)
    inv_s = lax.rsqrt(jnp.maximum(jnp.sum(gs * gs, axis=0, keepdims=True), eps2))
    inv_t = lax.rsqrt(jnp.maximum(jnp.sum(gt * gt, axis=0, keepdims=True), eps2))

    d = gt * inv_t - gs * inv_s
    sq = d * d
    if elemwise_acc:
        acc_ref[...] = acc_ref[...] + sq                       # VPU-only adds
    else:
        acc_ref[...] = acc_ref[...] + jnp.sum(sq, axis=0, keepdims=True)


def _sim_loss_kernel(fs_ref, ft_ref, out_ref, acc_ref, *, bb, elemwise_acc):
    # Each grid step (batch chunk) is fully independent ("parallel"):
    # re-init the per-chunk accumulator every step.
    acc_ref[...] = jnp.zeros_like(acc_ref)

    if bb <= 4:
        # Very short trip count: static unroll keeps full scheduler visibility
        # without blowing the vreg file.
        for b in range(bb):
            _accumulate_one_sample(fs_ref, ft_ref, acc_ref, b, elemwise_acc)
    else:
        def body(b, carry):
            _accumulate_one_sample(fs_ref, ft_ref, acc_ref, b, elemwise_acc)
            return carry

        lax.fori_loop(0, bb, body, jnp.int32(0), unroll=4)

    # Single deferred reduction per chunk; the partial is broadcast into an
    # (8, 128)-aligned output block (lane-dense, unmasked store).
    partial = jnp.sum(acc_ref[...])
    out_ref[...] = jnp.broadcast_to(partial, (8, 128)).astype(jnp.float32)


def _vmem_capacity_bytes():
    try:
        info = pltpu.get_tpu_info()
        cap = getattr(info, "vmem_capacity_bytes", None)
        if cap:
            return int(cap)
    except Exception:
        pass
    return 64 << 20  # conservative default (v7x-sized)


def _choose_batch_block(B, per_b_bytes, budget_bytes):
    """Largest divisor of B whose double-buffered input blocks fit the budget.

    Prefers >= 2 chunks so the "parallel" grid axis can overlap DMA/compute
    (and use both TensorCores on v7x). bb is a leading block dim, so no
    (8, 128) alignment constraint applies to it.
    """
    divisors = [d for d in range(1, B + 1) if B % d == 0]
    fitting = [d for d in divisors if 2 * d * per_b_bytes <= budget_bytes]
    if not fitting:
        # TODO(synk): tile (N, C) as well if even a single sample overflows VMEM.
        return 1
    bb = max(fitting)
    if bb == B and B >= 2:
        smaller = [d for d in fitting if d <= B // 2]
        if smaller:
            bb = max(smaller)
    return bb


def similarity_loss(g_s, g_t, *, use_bf16_matmul=False):
    """Pallas implementation of Similarity.forward(g_s, g_t).

    Inputs follow the PyTorch call convention (N, B, C): dims 0/1 get swapped
    inside the loss, so "bsz" is dim 1. The wrapper does a one-time transpose
    to (B, N, C) so the kernel indexes samples on the leading axis.
    `use_bf16_matmul=True` (opt-in) casts f32 inputs to bf16 for the Gram
    matmuls (native MXU rate, half the input HBM traffic).
    """
    N, B, Cs = g_s.shape
    Nt, Bt, Ct = g_t.shape
    assert (N, B) == (Nt, Bt), "G_t - G_s requires matching (N, bsz)"

    # One-time layout fix (XLA op): (N, B, C) -> (B, N, C).
    f_s = jnp.transpose(g_s, (1, 0, 2))
    f_t = jnp.transpose(g_t, (1, 0, 2))
    if use_bf16_matmul:
        if f_s.dtype == jnp.float32:
            f_s = f_s.astype(jnp.bfloat16)
        if f_t.dtype == jnp.float32:
            f_t = f_t.astype(jnp.bfloat16)

    isz_s = jnp.dtype(f_s.dtype).itemsize
    isz_t = jnp.dtype(f_t.dtype).itemsize

    # Generation-aware VMEM budgets (v7x: 64 MiB/TC; v5e/v6e: 128 MiB).
    vmem_cap = _vmem_capacity_bytes()
    if vmem_cap >= (100 << 20):
        chunk_budget, vmem_ceiling = 48 << 20, 96 << 20      # v5e / v6e
    else:
        chunk_budget, vmem_ceiling = 14 << 20, 48 << 20      # v7x

    per_b_bytes = N * (Cs * isz_s + Ct * isz_t)
    bb = _choose_batch_block(B, per_b_bytes, chunk_budget)
    num_chunks = B // bb

    # Deferred-reduction accumulator: full (N, N) when cheap, else per-column.
    elemwise_acc = (N * N * 4) <= (1 << 20)
    acc_shape = (N, N) if elemwise_acc else (1, N)

    # TODO(synk): for N >= ~2k, tile the (N, N) Gram over (i, j) sub-blocks with
    #             a two-pass column-norm structure; required to fit v7x's 64 MiB VMEM.
    # TODO(synk): for tiny N/C, stack [Xs; Xt] (and several b) along M with C
    #             zero-padded to raise MXU occupancy of a single pass.

    tmp_bytes = 12 * N * N * 4                 # live Gram temporaries (incl. small unroll)
    in_bytes = 2 * bb * per_b_bytes            # double-buffered input blocks
    acc_bytes = max(acc_shape[0], 8) * (((acc_shape[1] + 127) // 128) * 128) * 4
    vmem_est = in_bytes + tmp_bytes + acc_bytes + (2 << 20)
    vmem_limit = int(min(vmem_ceiling, max(32 << 20, vmem_est)))

    kernel = functools.partial(_sim_loss_kernel, bb=bb, elemwise_acc=elemwise_acc)
    partials = pl.pallas_call(
        kernel,
        out_shape=jax.ShapeDtypeStruct((num_chunks * 8, 128), jnp.float32),
        grid_spec=pltpu.PrefetchScalarGridSpec(
            num_scalar_prefetch=0,
            grid=(num_chunks,),
            in_specs=[
                pl.BlockSpec((bb, N, Cs), lambda i: (i, 0, 0)),
                pl.BlockSpec((bb, N, Ct), lambda i: (i, 0, 0)),
            ],
            out_specs=pl.BlockSpec((8, 128), lambda i: (i, 0)),
            scratch_shapes=[pltpu.VMEM(acc_shape, jnp.float32)],
        ),
        compiler_params=pltpu.CompilerParams(
            dimension_semantics=("parallel",),   # chunks independent; megacore-friendly
            vmem_limit_bytes=vmem_limit,
        ),
    )(f_s, f_t)

    # Each chunk's partial is replicated across its (8, 128) block; pick one
    # value per chunk, sum, and apply the 1/bsz^2 scale once.
    loss = jnp.sum(partials[0::8, 0]) / jnp.float32(B * B)
    return loss.reshape(1)   # matches the PyTorch loss shape: (1,)


def _similarity_loss_ref(g_s, g_t):
    """Pure-JAX reference mirroring the PyTorch code, for a sanity check."""
    f_s = jnp.transpose(g_s, (1, 0, 2)).astype(jnp.float32)
    f_t = jnp.transpose(g_t, (1, 0, 2)).astype(jnp.float32)
    bsz = f_s.shape[0]
    G_s = jnp.matmul(f_s, jnp.transpose(f_s, (0, 2, 1)))
    G_t = jnp.matmul(f_t, jnp.transpose(f_t, (0, 2, 1)))

    def normalize_dim1(G):
        n = jnp.sqrt(jnp.sum(G * G, axis=1, keepdims=True))
        return G / jnp.maximum(n, _EPS)

    G_diff = normalize_dim1(G_t) - normalize_dim1(G_s)
    return (jnp.sum(G_diff * G_diff) / (bsz * bsz)).reshape(1)


if __name__ == "__main__":
    key = jax.random.PRNGKey(0)
    k1, k2 = jax.random.split(key)
    # Inputs in PyTorch convention (N, B, C): N=8 samples, bsz(dim1)=4, C=32 feats.
    g_s = jax.random.normal(k1, (8, 4, 32), dtype=jnp.float32)
    g_t = jax.random.normal(k2, (8, 4, 32), dtype=jnp.float32)

    loss = similarity_loss(g_s, g_t)
    jax.block_until_ready(loss)

    ref = _similarity_loss_ref(g_s, g_t)
    assert loss.shape == (1,)
    assert jnp.allclose(loss, ref, rtol=1e-4, atol=1e-6), (loss, ref)

    print("KERNEL_OK")
</pallas_src>

<mosaic_0001>
module attributes {stable_mosaic.version = 11 : i64} {
  func.func @_sim_loss_kernel(%arg0: i32, %arg1: memref<2x8x32xf32, #tpu.memory_space<vmem>>, %arg2: memref<2x8x32xf32, #tpu.memory_space<vmem>>, %arg3: memref<8x128xf32, #tpu.memory_space<vmem>>, %arg4: memref<8x8xf32, #tpu.memory_space<vmem>>) attributes {dimension_semantics = [#tpu.dimension_semantics<parallel>], iteration_bounds = array<i64: 2>, scalar_prefetch = 0 : i64, scratch_operands = 1 : i64, tpu.core_type = #tpu.core_type<tc>, window_params = [{transform_indices = @transform_0, window_bounds = array<i64: 2, 8, 32>}, {transform_indices = @transform_1, window_bounds = array<i64: 2, 8, 32>}, {transform_indices = @transform_2, window_bounds = array<i64: 8, 128>}]} {
    %cst = arith.constant 0.000000e+00 : f32
    %0 = vector.broadcast %cst : f32 to vector<8x8xf32>
    %c0 = arith.constant 0 : index
    %c0_0 = arith.constant 0 : index
    %1 = vector.load %arg4[%c0, %c0_0] : memref<8x8xf32, #tpu.memory_space<vmem>>, vector<8x8xf32>
    tpu.vector_store %arg4[%c0, %c0_0], %0 {strides = array<i32>} : memref<8x8xf32, #tpu.memory_space<vmem>>, vector<8x8xf32>,
    %c0_1 = arith.constant 0 : index
    %c0_2 = arith.constant 0 : index
    %c0_3 = arith.constant 0 : index
    %2 = vector.load %arg1[%c0_1, %c0_2, %c0_3] : memref<2x8x32xf32, #tpu.memory_space<vmem>>, vector<1x8x32xf32>
    %3 = vector.shape_cast %2 : vector<1x8x32xf32> to vector<8x32xf32>
    %c0_4 = arith.constant 0 : index
    %c0_5 = arith.constant 0 : index
    %c0_6 = arith.constant 0 : index
    %4 = vector.load %arg2[%c0_4, %c0_5, %c0_6] : memref<2x8x32xf32, #tpu.memory_space<vmem>>, vector<1x8x32xf32>
    %5 = vector.shape_cast %4 : vector<1x8x32xf32> to vector<8x32xf32>
    %cst_7 = arith.constant dense<0.000000e+00> : vector<8x8xf32>
    %6 = tpu.matmul %3, %3, %cst_7 {dimension_numbers = #tpu.dot_dimension_numbers<[1], [1], [0], [0], [0, 0, 1, 0], [], []>} : vector<8x32xf32>, vector<8x32xf32>, vector<8x8xf32> -> vector<8x8xf32>
    %cst_8 = arith.constant dense<0.000000e+00> : vector<8x8xf32>
    %7 = tpu.matmul %5, %5, %cst_8 {dimension_numbers = #tpu.dot_dimension_numbers<[1], [1], [0], [0], [0, 0, 1, 0], [], []>} : vector<8x32xf32>, vector<8x32xf32>, vector<8x8xf32> -> vector<8x8xf32>
    %8 = arith.mulf %6, %6 : vector<8x8xf32>
    %cst_9 = arith.constant dense<0.000000e+00> : vector<8xf32>
    %9 = vector.multi_reduction <add>, %8, %cst_9 [0] : vector<8x8xf32> to vector<8xf32>
    %10 = vector.shape_cast %9 : vector<8xf32> to vector<1x8xf32>
    %cst_10 = arith.constant 1.000000e-24 : f32
    %11 = vector.broadcast %cst_10 : f32 to vector<1x8xf32>
    %12 = arith.maximumf %10, %11 : vector<1x8xf32>
    %13 = math.rsqrt %12 : vector<1x8xf32>
    %14 = arith.mulf %7, %7 : vector<8x8xf32>
    %cst_11 = arith.constant dense<0.000000e+00> : vector<8xf32>
    %15 = vector.multi_reduction <add>, %14, %cst_11 [0] : vector<8x8xf32> to vector<8xf32>
    %16 = vector.shape_cast %15 : vector<8xf32> to vector<1x8xf32>
    %cst_12 = arith.constant 1.000000e-24 : f32
    %17 = vector.broadcast %cst_12 : f32 to vector<1x8xf32>
    %18 = arith.maximumf %16, %17 : vector<1x8xf32>
    %19 = math.rsqrt %18 : vector<1x8xf32>
    %20 = vector.broadcast %19 : vector<1x8xf32> to vector<8x8xf32>
    %21 = arith.mulf %7, %20 : vector<8x8xf32>
    %22 = vector.broadcast %13 : vector<1x8xf32> to vector<8x8xf32>
    %23 = arith.mulf %6, %22 : vector<8x8xf32>
    %24 = arith.subf %21, %23 : vector<8x8xf32>
    %25 = arith.mulf %24, %24 : vector<8x8xf32>
    %c0_13 = arith.constant 0 : index
    %c0_14 = arith.constant 0 : index
    %26 = vector.load %arg4[%c0_13, %c0_14] : memref<8x8xf32, #tpu.memory_space<vmem>>, vector<8x8xf32>
    %27 = arith.addf %26, %25 : vector<8x8xf32>
    %c0_15 = arith.constant 0 : index
    %c0_16 = arith.constant 0 : index
    %28 = vector.load %arg4[%c0_15, %c0_16] : memref<8x8xf32, #tpu.memory_space<vmem>>, vector<8x8xf32>
    tpu.vector_store %arg4[%c0_15, %c0_16], %27 {strides = array<i32>} : memref<8x8xf32, #tpu.memory_space<vmem>>, vector<8x8xf32>,
    %c1 = arith.constant 1 : index
    %c0_17 = arith.constant 0 : index
    %c0_18 = arith.constant 0 : index
    %29 = vector.load %arg1[%c1, %c0_17, %c0_18] : memref<2x8x32xf32, #tpu.memory_space<vmem>>, vector<1x8x32xf32>
    %30 = vector.shape_cast %29 : vector<1x8x32xf32> to vector<8x32xf32>
    %c1_19 = arith.constant 1 : index
    %c0_20 = arith.constant 0 : index
    %c0_21 = arith.constant 0 : index
    %31 = vector.load %arg2[%c1_19, %c0_20, %c0_21] : memref<2x8x32xf32, #tpu.memory_space<vmem>>, vector<1x8x32xf32>
    %32 = vector.shape_cast %31 : vector<1x8x32xf32> to vector<8x32xf32>
    %cst_22 = arith.constant dense<0.000000e+00> : vector<8x8xf32>
    %33 = tpu.matmul %30, %30, %cst_22 {dimension_numbers = #tpu.dot_dimension_numbers<[1], [1], [0], [0], [0, 0, 1, 0], [], []>} : vector<8x32xf32>, vector<8x32xf32>, vector<8x8xf32> -> vector<8x8xf32>
    %cst_23 = arith.constant dense<0.000000e+00> : vector<8x8xf32>
    %34 = tpu.matmul %32, %32, %cst_23 {dimension_numbers = #tpu.dot_dimension_numbers<[1], [1], [0], [0], [0, 0, 1, 0], [], []>} : vector<8x32xf32>, vector<8x32xf32>, vector<8x8xf32> -> vector<8x8xf32>
    %35 = arith.mulf %33, %33 : vector<8x8xf32>
    %cst_24 = arith.constant dense<0.000000e+00> : vector<8xf32>
    %36 = vector.multi_reduction <add>, %35, %cst_24 [0] : vector<8x8xf32> to vector<8xf32>
    %37 = vector.shape_cast %36 : vector<8xf32> to vector<1x8xf32>
    %cst_25 = arith.constant 1.000000e-24 : f32
    %38 = vector.broadcast %cst_25 : f32 to vector<1x8xf32>
    %39 = arith.maximumf %37, %38 : vector<1x8xf32>
    %40 = math.rsqrt %39 : vector<1x8xf32>
    %41 = arith.mulf %34, %34 : vector<8x8xf32>
    %cst_26 = arith.constant dense<0.000000e+00> : vector<8xf32>
    %42 = vector.multi_reduction <add>, %41, %cst_26 [0] : vector<8x8xf32> to vector<8xf32>
    %43 = vector.shape_cast %42 : vector<8xf32> to vector<1x8xf32>
    %cst_27 = arith.constant 1.000000e-24 : f32
    %44 = vector.broadcast %cst_27 : f32 to vector<1x8xf32>
    %45 = arith.maximumf %43, %44 : vector<1x8xf32>
    %46 = math.rsqrt %45 : vector<1x8xf32>
    %47 = vector.broadcast %46 : vector<1x8xf32> to vector<8x8xf32>
    %48 = arith.mulf %34, %47 : vector<8x8xf32>
    %49 = vector.broadcast %40 : vector<1x8xf32> to vector<8x8xf32>
    %50 = arith.mulf %33, %49 : vector<8x8xf32>
    %51 = arith.subf %48, %50 : vector<8x8xf32>
    %52 = arith.mulf %51, %51 : vector<8x8xf32>
    %c0_28 = arith.constant 0 : index
    %c0_29 = arith.constant 0 : index
    %53 = vector.load %arg4[%c0_28, %c0_29] : memref<8x8xf32, #tpu.memory_space<vmem>>, vector<8x8xf32>
    %54 = arith.addf %53, %52 : vector<8x8xf32>
    %c0_30 = arith.constant 0 : index
    %c0_31 = arith.constant 0 : index
    %55 = vector.load %arg4[%c0_30, %c0_31] : memref<8x8xf32, #tpu.memory_space<vmem>>, vector<8x8xf32>
    tpu.vector_store %arg4[%c0_30, %c0_31], %54 {strides = array<i32>} : memref<8x8xf32, #tpu.memory_space<vmem>>, vector<8x8xf32>,
    %c0_32 = arith.constant 0 : index
    %c0_33 = arith.constant 0 : index
    %56 = vector.load %arg4[%c0_32, %c0_33] : memref<8x8xf32, #tpu.memory_space<vmem>>, vector<8x8xf32>
    %57 = vector.shape_cast %56 : vector<8x8xf32> to vector<1x8x8xf32>
    %cst_34 = arith.constant dense<0.000000e+00> : vector<1xf32>
    %58 = vector.multi_reduction <add>, %57, %cst_34 [1, 2] : vector<1x8x8xf32> to vector<1xf32>
    %59 = vector.shape_cast %58 : vector<1xf32> to vector<1x1x1xf32>
    %60 = vector.extract %59[0, 0, 0] : f32 from vector<1x1x1xf32>
    %61 = vector.broadcast %60 : f32 to vector<8x128xf32>
    %c0_35 = arith.constant 0 : index
    %c0_36 = arith.constant 0 : index
    %62 = vector.load %arg3[%c0_35, %c0_36] : memref<8x128xf32, #tpu.memory_space<vmem>>, vector<8x128xf32>
    tpu.vector_store %arg3[%c0_35, %c0_36], %61 {strides = array<i32>} : memref<8x128xf32, #tpu.memory_space<vmem>>, vector<8x128xf32>,
    return
  }
  func.func @transform_0(%arg0: i32) -> (i32, i32, i32) {
    %c0_i32 = arith.constant 0 : i32
    %c0_i32_0 = arith.constant 0 : i32
    %c0_i32_1 = arith.constant 0 : i32
    return %arg0, %c0_i32, %c0_i32_0 : i32, i32, i32
  }
  func.func @transform_1(%arg0: i32) -> (i32, i32, i32) {
    %c0_i32 = arith.constant 0 : i32
    %c0_i32_0 = arith.constant 0 : i32
    %c0_i32_1 = arith.constant 0 : i32
    return %arg0, %c0_i32, %c0_i32_0 : i32, i32, i32
  }
  func.func @transform_2(%arg0: i32) -> (i32, i32) {
    %c0_i32 = arith.constant 0 : i32
    %c0_i32_0 = arith.constant 0 : i32
    return %arg0, %c0_i32 : i32, i32
  }
}

</mosaic_0001>

<llo_original>
// kernel: tpu_custom_call.1
$region0: #{tpu_custom_call.1}
  #allocation0 [shape = 'u32[]', space=smem, size = 0x4, offset = 0x4, fixed_abs, tag = 'smem constant byte address 0x4 - core index']
  #allocation1 [shape = 'u32[72,128]{1,0:T(1,128)}', space=vmem, size = 0x9000, scoped, tag = 'internal scratch']
  #allocation2 [shape = 'f32[8,8]{1,0:T(8,128)}', space=vmem, size = 0x1000, scoped, tag = 'scratch operand']
  %s0 = inlined_call_operand.hbm [shape: f32[4,8,32], index: 0, kind: input, shape index: {}]
  %s1 = inlined_call_operand.hbm [shape: f32[4,8,32], index: 1, kind: input, shape index: {}]
  %s2 = inlined_call_operand.hbm [shape: f32[16,128], index: 2, kind: output, shape index: {}]
  %s3 = sld [smem:[#allocation0]]
  $region49: #{tpu_custom_call.1} parent=0
    _
  %s5 = ssub.s32 1, %s3
  %s6 = scalar_select 0, %s5, %s3
  $region1: #{tpu_custom_call.1} parent=0
    #allocation3 [shape = 'u8[16384]{0}', space=vmem, size = 0x4000, scoped, tag = 'input window, operand 0']
    #allocation4 [shape = 's32[2]{0}', space=sflag, size = 0x8, scoped, tag = 'scoped memory for tpu_custom_call.1']
    #allocation5 [shape = 's32[2]{0}', space=sflag, size = 0x8, scoped, tag = 'scoped memory for tpu_custom_call.1']
    #allocation6 [shape = 'u8[16384]{0}', space=vmem, size = 0x4000, scoped, tag = 'input window, operand 1']
    #allocation7 [shape = 's32[2]{0}', space=sflag, size = 0x8, scoped, tag = 'scoped memory for tpu_custom_call.1']
    #allocation8 [shape = 'u8[8192]{0}', space=vmem, size = 0x2000, scoped, tag = 'output window, operand 0']
    %7 = vsyncpa [#allocation4], 0
    %s8 = scalar_lea.sflag [#allocation4], 1
    %9 = vsyncpa %s8, 0
    %10 = vsyncpa [#allocation7], 0
    %s11 = scalar_lea.sflag [#allocation7], 1
    %12 = vsyncpa %s11, 0
    %13 = vsyncpa [#allocation5], 0
    %s14 = scalar_lea.sflag [#allocation5], 1
    %15 = vsyncpa %s14, 0
    loop: start=0, step=1, limit=4
    $region2: #{tpu_custom_call.1} parent=1 // loop_pre_header
      _
    $region3: #{tpu_custom_call.1} parent=1 // loop_header
      %s17 = sphi 0, %s21
      %p18 = scmp.ge.s32.totalorder %s17, 4
      %s27 = sphi 0, %s29
      %s30 = sphi 0, %s27
      %s31 = sphi 0, %s30
      %s47 = sphi 0, %s31
      %s53 = sphi 0, %s55
      %s56 = sphi 0, %s53
      %s57 = sphi 0, %s56
      %s73 = sphi 0, %s57
      %s79 = sphi 0, %s81
      %s82 = sphi 0, %s79
      %s83 = sphi 0, %s82
      %s99 = sphi 0, %s83
    $region4: #{tpu_custom_call.1} parent=1 // loop_header_branch
      %20 = sbr.rel (%p18) target = $region8
    $region5: #{tpu_custom_call.1} parent=1 // loop_body
      %s22 = ssub.s32 %s17, 1
      %s23 = ssub.s32 %s17, 2
      %s24 = sadd.s32 %s17, 1
      %s25 = ssub.s32 %s17, %s24
      %p26 = scmp.eq.s32.totalorder %s25, 0
      %s28 = sadd.s32 %s27, 1
      %s29 = scalar_select %p26, %s27, %s28
      %p32 = pneg %p26
      %p33 = scmp.eq.s32.totalorder %s17, 1
      %p34 = por %p32, %p33
      %p35 = scmp.ne.s32.totalorder %s27, %s30
      %p36 = scmp.eq.s32.totalorder %s17, 0
      %p37 = por %p35, %p36
      %p38 = scmp.ne.s32.totalorder %s27, %s30
      %p39 = scmp.eq.s32.totalorder %s22, 1
      %p40 = por %p38, %p39
      %p41 = scmp.ne.s32.totalorder %s30, %s31
      %p42 = scmp.eq.s32.totalorder %s22, 0
      %p43 = por %p41, %p42
      %p44 = scmp.ne.s32.totalorder %s30, %s31
      %p45 = scmp.eq.s32.totalorder %s23, 1
      %p46 = por %p44, %p45
      %p48 = scmp.ne.s32.totalorder %s31, %s47
      %p49 = scmp.eq.s32.totalorder %s23, 0
      %p50 = por %p48, %p49
      %s51 = ssub.s32 %s17, %s24
      %p52 = scmp.eq.s32.totalorder %s51, 0
      %s54 = sadd.s32 %s53, 1
      %s55 = scalar_select %p52, %s53, %s54
      %p58 = pneg %p52
      %p59 = scmp.eq.s32.totalorder %s17, 1
      %p60 = por %p58, %p59
      %p61 = scmp.ne.s32.totalorder %s53, %s56
      %p62 = scmp.eq.s32.totalorder %s17, 0
      %p63 = por %p61, %p62
      %p64 = scmp.ne.s32.totalorder %s53, %s56
      %p65 = scmp.eq.s32.totalorder %s22, 1
      %p66 = por %p64, %p65
      %p67 = scmp.ne.s32.totalorder %s56, %s57
      %p68 = scmp.eq.s32.totalorder %s22, 0
      %p69 = por %p67, %p68
      %p70 = scmp.ne.s32.totalorder %s56, %s57
      %p71 = scmp.eq.s32.totalorder %s23, 1
      %p72 = por %p70, %p71
      %p74 = scmp.ne.s32.totalorder %s57, %s73
      %p75 = scmp.eq.s32.totalorder %s23, 0
      %p76 = por %p74, %p75
      %s77 = ssub.s32 %s17, %s24
      %p78 = scmp.eq.s32.totalorder %s77, 0
      %s80 = sadd.s32 %s79, 1
      %s81 = scalar_select %p78, %s79, %s80
      %p84 = pneg %p78
      %p85 = scmp.eq.s32.totalorder %s17, 1
      %p86 = por %p84, %p85
      %p87 = scmp.ne.s32.totalorder %s79, %s82
      %p88 = scmp.eq.s32.totalorder %s17, 0
      %p89 = por %p87, %p88
      %p90 = scmp.ne.s32.totalorder %s79, %s82
      %p91 = scmp.eq.s32.totalorder %s22, 1
      %p92 = por %p90, %p91
      %p93 = scmp.ne.s32.totalorder %s82, %s83
      %p94 = scmp.eq.s32.totalorder %s22, 0
      %p95 = por %p93, %p94
      %p96 = scmp.ne.s32.totalorder %s82, %s83
      %p97 = scmp.eq.s32.totalorder %s23, 1
      %p98 = por %p96, %p97
      %p100 = scmp.ne.s32.totalorder %s83, %s99
      %p101 = scmp.eq.s32.totalorder %s23, 0
      %p102 = por %p100, %p101
      %p103 = scmp.le.s32.totalorder 1, %s17
      %p104 = scmp.lt.s32.totalorder %s17, 3
      %p105 = pnand %p103, %p104
      %p106 = pneg %p105
      // Predicated region
      $region9: #{tpu_custom_call.1} parent=5 // pred_check
        _
      $region10: #{tpu_custom_call.1} parent=5 // pred_check_branch
        %108 = sbr.rel (%p105) target = $region12
      $region11: #{tpu_custom_call.1} parent=5 // pred_region
        %s109 = ssub.s32 %s17, 1
      $region12: #{tpu_custom_call.1} parent=5 // pred_fallthru
        _
      %p110 = scmp.lt.s32.totalorder %s17, 2
      // Predicated region
      $region13: #{tpu_custom_call.1} parent=5 // pred_check
        %p111 = pneg %p110
      $region14: #{tpu_custom_call.1} parent=5 // pred_check_branch
        %113 = sbr.rel (%p111) target = $region16
      $region15: #{tpu_custom_call.1} parent=5 // pred_region
        // Predicated region
        $region17: #{tpu_custom_call.1} parent=15 // pred_check
          %p114 = pneg %p37
        $region18: #{tpu_custom_call.1} parent=15 // pred_check_branch
          %116 = sbr.rel (%p114) target = $region20
        $region19: #{tpu_custom_call.1} parent=15 // pred_region
          %s117 = sand.u32 %s27, 1
          %s118 = scalar_lea.sflag [#allocation4], %s117
          %s119 = sand.u32 %s27, 1
          %s120 = smul.addr %s119, 16
          %s121 = scalar_lea.vmem [#allocation3], %s120
          %s122 = smul.u32 2, %s17
          %124 = vsyncadd %s118, 0
          %s125 = smul.addr %s122, 8
          %s126 = scalar_lea.hbm %s0, %s125
          %s127 = sshll.u32 %s126, 4
          %s128 = int_to_ptr.hbm [resolvable:$true] %s127
          %s129 = sshll.u32 %s121, 4
          %s130 = int_to_ptr.vmem [resolvable:$true] %s129
          %135 = dma.hbm_to_vmem [thread:$0]  %s128, 256, %s130, %s118, 128, 128, 8
        $region20: #{tpu_custom_call.1} parent=15 // pred_fallthru
          _
        // Predicated region
        $region21: #{tpu_custom_call.1} parent=15 // pred_check
          %p136 = pneg %p63
        $region22: #{tpu_custom_call.1} parent=15 // pred_check_branch
          %138 = sbr.rel (%p136) target = $region24
        $region23: #{tpu_custom_call.1} parent=15 // pred_region
          %s139 = sand.u32 %s53, 1
          %s140 = scalar_lea.sflag [#allocation7], %s139
          %s141 = sand.u32 %s53, 1
          %s142 = smul.addr %s141, 16
          %s143 = scalar_lea.vmem [#allocation6], %s142
          %s144 = smul.u32 2, %s17
          %146 = vsyncadd %s140, 0
          %s147 = smul.addr %s144, 8
          %s148 = scalar_lea.hbm %s1, %s147
          %s149 = sshll.u32 %s148, 4
          %s150 = int_to_ptr.hbm [resolvable:$true] %s149
          %s151 = sshll.u32 %s143, 4
          %s152 = int_to_ptr.vmem [resolvable:$true] %s151
          %157 = dma.hbm_to_vmem [thread:$0]  %s150, 256, %s152, %s140, 128, 128, 8
        $region24: #{tpu_custom_call.1} parent=15 // pred_fallthru
          _
      $region16: #{tpu_custom_call.1} parent=5 // pred_fallthru
        _
      %p158 = scmp.le.s32.totalorder 1, %s17
      %p159 = scmp.lt.s32.totalorder %s17, 3
      %p160 = pnand %p158, %p159
      %p161 = pneg %p160
      // Predicated region
      $region25: #{tpu_custom_call.1} parent=5 // pred_check
        _
      $region26: #{tpu_custom_call.1} parent=5 // pred_check_branch
        %163 = sbr.rel (%p160) target = $region28
      $region27: #{tpu_custom_call.1} parent=5 // pred_region
        %s164 = ssub.s32 %s17, 1
        %s165 = sand.u32 %s30, 1
        %s166 = scalar_lea.sflag [#allocation4], %s165
        %s167 = sand.u32 %s30, 1
        %s168 = smul.addr %s167, 16
        %s169 = scalar_lea.vmem [#allocation3], %s168
        // Predicated region
        $region29: #{tpu_custom_call.1} parent=27 // pred_check
          %p170 = pneg %p43
        $region30: #{tpu_custom_call.1} parent=27 // pred_check_branch
          %172 = sbr.rel (%p170) target = $region32
        $region31: #{tpu_custom_call.1} parent=27 // pred_region
          %174 = dma.done %s166, 256
        $region32: #{tpu_custom_call.1} parent=27 // pred_fallthru
          _
        %s175 = sand.u32 %s56, 1
        %s176 = scalar_lea.sflag [#allocation7], %s175
        %s177 = sand.u32 %s56, 1
        %s178 = smul.addr %s177, 16
        %s179 = scalar_lea.vmem [#allocation6], %s178
        // Predicated region
        $region33: #{tpu_custom_call.1} parent=27 // pred_check
          %p180 = pneg %p69
        $region34: #{tpu_custom_call.1} parent=27 // pred_check_branch
          %182 = sbr.rel (%p180) target = $region36
        $region35: #{tpu_custom_call.1} parent=27 // pred_region
          %184 = dma.done %s176, 256
        $region36: #{tpu_custom_call.1} parent=27 // pred_fallthru
          _
        %s185 = sand.u32 %s30, 1
        %s186 = scalar_lea.sflag [#allocation4], %s185
        %s187 = sand.u32 %s30, 1
        %s188 = smul.addr %s187, 16
        %s189 = scalar_lea.vmem [#allocation3], %s188
        %p190 = pneg %p43
        %p191 = pneg %p40
        %s192 = sand.u32 %s56, 1
        %s193 = scalar_lea.sflag [#allocation7], %s192
        %s194 = sand.u32 %s56, 1
        %s195 = smul.addr %s194, 16
        %s196 = scalar_lea.vmem [#allocation6], %s195
        %p197 = pneg %p69
        %p198 = pneg %p66
        %p199 = pneg %p95
        %p200 = pneg %p92
        %s201 = sand.u32 %s82, 1
        %s202 = scalar_lea.sflag [#allocation5], %s201
        %s203 = sand.u32 %s82, 1
        %s204 = smul.addr %s203, 8
        %s205 = scalar_lea.vmem [#allocation8], %s204
        %s206 = smul.u32 2, %s22
        %s207 = smul.u32 2, %s22
        %vm208 = vcmask 64512
        %209 = vst.msk [vmem:[#allocation2] sm:$0xff] %vm208, 0.0
        %v210 = vld [vmem:[%s169] sm:$0xff]
        %v211 = vld [vmem:[%s179] sm:$0xff]
        %vm212 = vcmask 261120
        %v214 = vsel %vm212, %v210, 0
        %216 = vmatpush.xpose.msra.mxu0 0.0
        %217 = vmatpush.xpose.msra.mxu0 0.0
        %218 = vmatpush.xpose.msra.mxu0 0.0
        %219 = vmatpush.xpose.msra.mxu0 0.0
        %220 = vmatpush.xpose.msra.mxu0 0.0
        %221 = vmatpush.xpose.msra.mxu0 0.0
        %222 = vmatpush.xpose.msra.mxu0 0.0
        %223 = vmatpush.xpose.msra.mxu0 0.0
        %224 = vmatpush.xpose.msra.mxu0 0.0
        %225 = vmatpush.xpose.msra.mxu0 0.0
        %226 = vmatpush.xpose.msra.mxu0 0.0
        %227 = vmatpush.xpose.msra.mxu0 0.0
        %228 = vmatpush.xpose.msra.mxu0 0.0
        %229 = vmatpush.xpose.msra.mxu0 0.0
        %230 = vmatpush.xpose.msra.mxu0 0.0
        %231 = vmatpush.xpose.msra.mxu0 %v214
        %232 = vmatmul.f32.gmra.mxu0 %v214
        %v233 = vpop.f32.mrf.mxu0
        %v234 = vadd.f32 0.0, %v233
        %235 = vdwg.mxu0
        %v237 = vsel %vm212, %v211, 0
        %239 = vmatpush.xpose.msra.mxu0 0.0
        %240 = vmatpush.xpose.msra.mxu0 0.0
        %241 = vmatpush.xpose.msra.mxu0 0.0
        %242 = vmatpush.xpose.msra.mxu0 0.0
        %243 = vmatpush.xpose.msra.mxu0 0.0
        %244 = vmatpush.xpose.msra.mxu0 0.0
        %245 = vmatpush.xpose.msra.mxu0 0.0
        %246 = vmatpush.xpose.msra.mxu0 0.0
        %247 = vmatpush.xpose.msra.mxu0 0.0
        %248 = vmatpush.xpose.msra.mxu0 0.0
        %249 = vmatpush.xpose.msra.mxu0 0.0
        %250 = vmatpush.xpose.msra.mxu0 0.0
        %251 = vmatpush.xpose.msra.mxu0 0.0
        %252 = vmatpush.xpose.msra.mxu0 0.0
        %253 = vmatpush.xpose.msra.mxu0 0.0
        %254 = vmatpush.xpose.msra.mxu0 %v237
        %255 = vmatmul.f32.gmra.mxu0 %v237
        %v256 = vpop.f32.mrf.mxu0
        %v257 = vadd.f32 0.0, %v256
        %258 = vdwg.mxu0
        %v259 = vmul.f32 %v234, %v234
        %v260 = vsel %vm208, %v259, 0.0
        %v261 = vrot.slane %v260, 4
        %v262 = vadd.f32 %v260, %v261
        %v263 = vrot.slane %v262, 2
        %v264 = vadd.f32 %v262, %v263
        %v265 = vrot.slane %v264, 1
        %v266 = vadd.f32 %v264, %v265
        %v267 = vmax.f32 %v266, 1e-24
        %v268 = vrsqrt.pop %v267
        %v269 = vmul.f32 %v268, %v267
        %v270 = vmul.f32 %v269, %v268
        %v271 = vmul.f32 0.5, %v270
        %v272 = vsub.f32 1.5, %v271
        %v273 = vmul.f32 %v268, %v272
        %vm274 = vweird.f32 %v267
        %vm275 = vweird.f32 %v268
        %vm276 = vmor %vm274, %vm275
        %v277 = vsel %vm276, %v268, %v273
        %v278 = vmul.f32 %v257, %v257
        %v279 = vsel %vm208, %v278, 0.0
        %v280 = vrot.slane %v279, 4
        %v281 = vadd.f32 %v279, %v280
        %v282 = vrot.slane %v281, 2
        %v283 = vadd.f32 %v281, %v282
        %v284 = vrot.slane %v283, 1
        %v285 = vadd.f32 %v283, %v284
        %v286 = vmax.f32 %v285, 1e-24
        %v287 = vrsqrt.pop %v286
        %v288 = vmul.f32 %v287, %v286
        %v289 = vmul.f32 %v288, %v287
        %v290 = vmul.f32 0.5, %v289
        %v291 = vsub.f32 1.5, %v290
        %v292 = vmul.f32 %v287, %v291
        %vm293 = vweird.f32 %v286
        %vm294 = vweird.f32 %v287
        %vm295 = vmor %vm293, %vm294
        %v296 = vsel %vm295, %v287, %v292
        %v297 = vmul.f32 %v257, %v296
        %v298 = vmul.f32 %v234, %v277
        %v299 = vsub.f32 %v297, %v298
        %v300 = vmul.f32 %v299, %v299
        %v301 = vld [vmem:[#allocation2] sm:$0xff]
        %v302 = vadd.f32 %v301, %v300
        %303 = vst.msk [vmem:[#allocation2] sm:$0xff] %vm208, %v302
        %s304 = scalar_lea.vmem %s169, 8 [#allocation3]
        %v305 = vld [vmem:[%s304] sm:$0xff]
        %s306 = scalar_lea.vmem %s179, 8 [#allocation6]
        %v307 = vld [vmem:[%s306] sm:$0xff]
        %v309 = vsel %vm212, %v305, 0
        %311 = vmatpush.xpose.msra.mxu0 0.0
        %312 = vmatpush.xpose.msra.mxu0 0.0
        %313 = vmatpush.xpose.msra.mxu0 0.0
        %314 = vmatpush.xpose.msra.mxu0 0.0
        %315 = vmatpush.xpose.msra.mxu0 0.0
        %316 = vmatpush.xpose.msra.mxu0 0.0
        %317 = vmatpush.xpose.msra.mxu0 0.0
        %318 = vmatpush.xpose.msra.mxu0 0.0
        %319 = vmatpush.xpose.msra.mxu0 0.0
        %320 = vmatpush.xpose.msra.mxu0 0.0
        %321 = vmatpush.xpose.msra.mxu0 0.0
        %322 = vmatpush.xpose.msra.mxu0 0.0
        %323 = vmatpush.xpose.msra.mxu0 0.0
        %324 = vmatpush.xpose.msra.mxu0 0.0
        %325 = vmatpush.xpose.msra.mxu0 0.0
        %326 = vmatpush.xpose.msra.mxu0 %v309
        %327 = vmatmul.f32.gmra.mxu0 %v309
        %v328 = vpop.f32.mrf.mxu0
        %v329 = vadd.f32 0.0, %v328
        %330 = vdwg.mxu0
        %v332 = vsel %vm212, %v307, 0
        %334 = vmatpush.xpose.msra.mxu0 0.0
        %335 = vmatpush.xpose.msra.mxu0 0.0
        %336 = vmatpush.xpose.msra.mxu0 0.0
        %337 = vmatpush.xpose.msra.mxu0 0.0
        %338 = vmatpush.xpose.msra.mxu0 0.0
        %339 = vmatpush.xpose.msra.mxu0 0.0
        %340 = vmatpush.xpose.msra.mxu0 0.0
        %341 = vmatpush.xpose.msra.mxu0 0.0
        %342 = vmatpush.xpose.msra.mxu0 0.0
        %343 = vmatpush.xpose.msra.mxu0 0.0
        %344 = vmatpush.xpose.msra.mxu0 0.0
        %345 = vmatpush.xpose.msra.mxu0 0.0
        %346 = vmatpush.xpose.msra.mxu0 0.0
        %347 = vmatpush.xpose.msra.mxu0 0.0
        %348 = vmatpush.xpose.msra.mxu0 0.0
        %349 = vmatpush.xpose.msra.mxu0 %v332
        %350 = vmatmul.f32.gmra.mxu0 %v332
        %v351 = vpop.f32.mrf.mxu0
        %v352 = vadd.f32 0.0, %v351
        %353 = vdwg.mxu0
        %v354 = vmul.f32 %v329, %v329
        %v355 = vsel %vm208, %v354, 0.0
        %v356 = vrot.slane %v355, 4
        %v357 = vadd.f32 %v355, %v356
        %v358 = vrot.slane %v357, 2
        %v359 = vadd.f32 %v357, %v358
        %v360 = vrot.slane %v359, 1
        %v361 = vadd.f32 %v359, %v360
        %v362 = vmax.f32 %v361, 1e-24
        %v363 = vrsqrt.pop %v362
        %v364 = vmul.f32 %v363, %v362
        %v365 = vmul.f32 %v364, %v363
        %v366 = vmul.f32 0.5, %v365
        %v367 = vsub.f32 1.5, %v366
        %v368 = vmul.f32 %v363, %v367
        %vm369 = vweird.f32 %v362
        %vm370 = vweird.f32 %v363
        %vm371 = vmor %vm369, %vm370
        %v372 = vsel %vm371, %v363, %v368
        %v373 = vmul.f32 %v352, %v352
        %v374 = vsel %vm208, %v373, 0.0
        %v375 = vrot.slane %v374, 4
        %v376 = vadd.f32 %v374, %v375
        %v377 = vrot.slane %v376, 2
        %v378 = vadd.f32 %v376, %v377
        %v379 = vrot.slane %v378, 1
        %v380 = vadd.f32 %v378, %v379
        %v381 = vmax.f32 %v380, 1e-24
        %v382 = vrsqrt.pop %v381
        %v383 = vmul.f32 %v382, %v381
        %v384 = vmul.f32 %v383, %v382
        %v385 = vmul.f32 0.5, %v384
        %v386 = vsub.f32 1.5, %v385
        %v387 = vmul.f32 %v382, %v386
        %vm388 = vweird.f32 %v381
        %vm389 = vweird.f32 %v382
        %vm390 = vmor %vm388, %vm389
        %v391 = vsel %vm390, %v382, %v387
        %v392 = vmul.f32 %v352, %v391
        %v393 = vmul.f32 %v329, %v372
        %v394 = vsub.f32 %v392, %v393
        %v395 = vmul.f32 %v394, %v394
        %v396 = vld [vmem:[#allocation2] sm:$0xff]
        %v397 = vadd.f32 %v396, %v395
        %398 = vst.msk [vmem:[#allocation2] sm:$0xff] %vm208, %v397
        %v399 = vld [vmem:[#allocation2] sm:$0xff]
        %v400 = vsel %vm208, %v399, 0.0
        %401 = vadd.xlane.f32.xlu0 %v400
        %v402 = vpop.xlane.xlu0 %401
        %v403 = vrot.slane %v402, 4
        %v404 = vadd.f32 %v402, %v403
        %v405 = vrot.slane %v404, 2
        %v406 = vadd.f32 %v404, %v405
        %v407 = vrot.slane %v406, 1
        %v408 = vadd.f32 %v406, %v407
        %s409 = vtos %v408
        %v410 = vstv %s409
        %411 = vst [vmem:[%s205] sm:$0xff] %v410
        %s412 = sand.u32 %s82, 1
        %s413 = scalar_lea.sflag [#allocation5], %s412
        %s414 = sand.u32 %s82, 1
        %s415 = smul.addr %s414, 8
        %s416 = scalar_lea.vmem [#allocation8], %s415
        // Predicated region
        $region37: #{tpu_custom_call.1} parent=27 // pred_check
          %p417 = pneg %p92
        $region38: #{tpu_custom_call.1} parent=27 // pred_check_branch
          %419 = sbr.rel (%p417) target = $region40
        $region39: #{tpu_custom_call.1} parent=27 // pred_region
          %421 = vsyncadd %s413, 0
          %s422 = smul.addr %s22, 8
          %s423 = scalar_lea.hbm %s2, %s422
          %s425 = sshll.u32 %s416, 4
          %s426 = int_to_ptr.vmem [resolvable:$true] %s425
          %s427 = sshll.u32 %s423, 4
          %s428 = int_to_ptr.hbm [resolvable:$true] %s427
          %430 = dma.vmem_to_hbm [thread:$0]  %s426, 128, %s428, %s413
        $region40: #{tpu_custom_call.1} parent=27 // pred_fallthru
          _
      $region28: #{tpu_custom_call.1} parent=5 // pred_fallthru
        _
      %p431 = scmp.le.s32.totalorder 2, %s17
      // Predicated region
      $region41: #{tpu_custom_call.1} parent=5 // pred_check
        %p432 = pneg %p431
      $region42: #{tpu_custom_call.1} parent=5 // pred_check_branch
        %434 = sbr.rel (%p432) target = $region44
      $region43: #{tpu_custom_call.1} parent=5 // pred_region
        %s435 = ssub.s32 %s17, 2
        // Predicated region
        $region45: #{tpu_custom_call.1} parent=43 // pred_check
          %p436 = pneg %p98
        $region46: #{tpu_custom_call.1} parent=43 // pred_check_branch
          %438 = sbr.rel (%p436) target = $region48
        $region47: #{tpu_custom_call.1} parent=43 // pred_region
          %s439 = sand.u32 %s83, 1
          %s440 = scalar_lea.sflag [#allocation5], %s439
          %s441 = sand.u32 %s83, 1
          %s442 = smul.addr %s441, 8
          %s443 = scalar_lea.vmem [#allocation8], %s442
          %445 = dma.done %s440, 128
        $region48: #{tpu_custom_call.1} parent=43 // pred_fallthru
          _
      $region44: #{tpu_custom_call.1} parent=5 // pred_fallthru
        _
    $region6: #{tpu_custom_call.1} parent=1 // loop_footer
      %s21 = sadd.s32 1, %s17
    $region7: #{tpu_custom_call.1} parent=1 // loop_footer_branch
      %16 = sbr.rel target = $region3
    $region8: #{tpu_custom_call.1} parent=1 // loop_exit
      _
    %446 = vsyncpa [#allocation4], 1
    %s447 = scalar_lea.sflag [#allocation4], 1
    %448 = vsyncpa %s447, 1
    %449 = vsyncpa [#allocation7], 1
    %s450 = scalar_lea.sflag [#allocation7], 1
    %451 = vsyncpa %s450, 1
    %452 = vsyncpa [#allocation5], 1
    %s453 = scalar_lea.sflag [#allocation5], 1
    %454 = vsyncpa %s453, 1

</llo_original>
